<compile_context>
chip_gen: v6e
topology: v6e:2x2x1
jax: 0.10.0
libtpu: 0.0.40
codegen_flags: <defaults>
</compile_context>

<pallas_src>
import functools

import jax
import jax.numpy as jnp
import numpy as np
from jax.experimental import pallas as pl
from jax.experimental.pallas import tpu as pltpu

# ---------------- configuration (matches Discriminator.__init__ args) --------
P = 32                        # p: input feature dim
HIDDEN_UNITS = (64, 128, 32)  # hidden_units
ACTIVATION = "LeakyReLU"      # middle layers (negative_slope=0.2)
ACTIVATION_1 = "Sigmoid"      # first layer
ACTIVATION_N = "ReLU"         # last hidden layer
PROB = True                   # apply Sigmoid to d

TILE_B = 2048                 # max batch tile (sublane-aligned); VMEM footprint
                              # per tile stays ~4 MiB incl. double buffers
SMALL_BATCH = 256             # below this a single grid step is fine


def _leaky_relu(x, slope=0.2):
    return jnp.where(x >= 0, x, slope * x)


def _apply_act(x, name):
    if name == "Sigmoid":
        return jax.nn.sigmoid(x)
    if name == "ReLU":
        return jnp.maximum(x, 0.0)
    if name == "LeakyReLU":
        return _leaky_relu(x)
    raise NameError(name)


def _round_up(n, m):
    return ((n + m - 1) // m) * m


def discriminator_kernel(x_ref,
                         w1_ref, b1_ref,
                         w2_ref, b2_ref,
                         w3_ref, b3_ref,
                         wl_ref, bl_ref,
                         feat_ref, d_ref,
                         *, prob):
    """Fused 3-layer MLP + head for one batch tile.

    Weights w1/w2/w3 arrive as bf16; matmuls run on the bf16 MXU path with
    f32 accumulation.  Bias adds, activations and the head reduction stay
    in f32 (v5e-safe).  Rows in a ragged tail block may contain garbage; all
    ops are row-independent and those rows are never written back.
    """
    # lyr1 + act1 (Sigmoid)
    h = jnp.dot(x_ref[...].astype(jnp.bfloat16), w1_ref[...],
                preferred_element_type=jnp.float32) + b1_ref[...]
    h = _apply_act(h, ACTIVATION_1)

    # lyr2 + act2 (LeakyReLU 0.2)
    h = jnp.dot(h.astype(jnp.bfloat16), w2_ref[...],
                preferred_element_type=jnp.float32) + b2_ref[...]
    h = _apply_act(h, ACTIVATION)

    # lyr3 + act3 (ReLU)  -> feature output
    h = jnp.dot(h.astype(jnp.bfloat16), w3_ref[...],
                preferred_element_type=jnp.float32) + b3_ref[...]
    h = _apply_act(h, ACTIVATION_N)
    feat_ref[...] = h.astype(feat_ref.dtype)

    # map_last: Linear(h3, 1).  N=1 would waste 255/256 of the MXU and
    # serialize behind the third matmul, so do it as a VPU multiply + lane
    # reduction instead (wl is a (1, h3) f32 row).
    d = jnp.sum(h * wl_ref[...], axis=-1, keepdims=True) + bl_ref[...]
    if prob:
        d = jax.nn.sigmoid(d)
    d_ref[...] = d.astype(d_ref.dtype)


def init_params(key, p, hidden_units):
    """Deterministic parameter init.

    Hidden weights stored as (in, out), biases as (1, out).  The head weight
    is stored as a (1, hidden[-1]) row (Linear(h3, 1) weight transposed),
    head bias as (1, 1).
    """
    dims = (p,) + tuple(hidden_units)
    params = []
    keys = jax.random.split(key, len(hidden_units) + 1)
    for i in range(len(hidden_units)):
        fan_in, fan_out = dims[i], dims[i + 1]
        w = jax.random.normal(keys[i], (fan_in, fan_out), jnp.float32) / np.sqrt(fan_in)
        b = jnp.zeros((1, fan_out), jnp.float32) + 0.01 * (i + 1)
        params += [w, b]
    wl = jax.random.normal(keys[-1], (1, hidden_units[-1]), jnp.float32) / np.sqrt(
        hidden_units[-1])
    bl = jnp.full((1, 1), 0.05, jnp.float32)
    params += [wl, bl]
    return params


def _choose_tile(b, tile_b_max):
    """Sublane-aligned batch tile.

    Small batches: one step.  Larger batches: at least 2 grid steps so the
    "parallel" batch axis can shard across both TensorCores on v7x (no-op on
    v5e/v6e which have a single TC), capped at tile_b_max.
    """
    if b <= SMALL_BATCH:
        return _round_up(max(b, 1), 8)
    return min(tile_b_max, _round_up(pl.cdiv(b, 2), 8))


def discriminator_forward(x, params, *, p=P, hidden_units=HIDDEN_UNITS,
                          prob=PROB, tile_b=TILE_B, feat_dtype=jnp.float32):
    x2 = x.reshape(-1, p)                       # x.view(-1, self.p)
    # Accept f32 or bf16 directly (kernel casts the MXU LHS itself); only
    # normalize genuinely odd dtypes.  No wrapper-side bf16 cast pass.
    if x2.dtype not in (jnp.dtype("float32"), jnp.dtype("bfloat16")):
        x2 = x2.astype(jnp.float32)
    b = x2.shape[0]
    h1, h2, h3 = hidden_units

    tile_b = _choose_tile(b, tile_b)
    grid = (pl.cdiv(b, tile_b),)                # ragged tail handled by Pallas

    w1, b1, w2, b2, w3, b3, wl, bl = params
    # bf16 weights: half the weight DMA/VMEM and full-rate bf16 MXU path.
    # Accuracy preserved via f32 accumulation inside the kernel.
    w1b = w1.astype(jnp.bfloat16)
    w2b = w2.astype(jnp.bfloat16)
    w3b = w3.astype(jnp.bfloat16)

    full = lambda i: (0, 0)  # whole (untiled) array every grid step
    kernel = functools.partial(discriminator_kernel, prob=prob)

    # Advisory cost hint so XLA can overlap this short call with neighbors.
    flops = 2 * b * (p * h1 + h1 * h2 + h2 * h3 + h3)
    transcendentals = b * (h1 + (1 if prob else 0))     # layer-1 sigmoid + head
    weight_bytes = 2 * (w1b.size + w2b.size + w3b.size) + 4 * (
        b1.size + b2.size + b3.size + wl.size + bl.size)
    bytes_accessed = (x2.size * x2.dtype.itemsize
                      + b * h3 * jnp.dtype(feat_dtype).itemsize
                      + b * 4 + weight_bytes)
    cost = pl.CostEstimate(flops=int(flops),
                           transcendentals=int(transcendentals),
                           bytes_accessed=int(bytes_accessed))

    feat, d = pl.pallas_call(
        kernel,
        out_shape=(
            jax.ShapeDtypeStruct((b, h3), feat_dtype),
            jax.ShapeDtypeStruct((b, 1), jnp.float32),
        ),
        grid_spec=pltpu.PrefetchScalarGridSpec(
            num_scalar_prefetch=0,
            grid=grid,
            in_specs=[
                pl.BlockSpec((tile_b, p), lambda i: (i, 0)),
                pl.BlockSpec(w1b.shape, full), pl.BlockSpec(b1.shape, full),
                pl.BlockSpec(w2b.shape, full), pl.BlockSpec(b2.shape, full),
                pl.BlockSpec(w3b.shape, full), pl.BlockSpec(b3.shape, full),
                pl.BlockSpec(wl.shape, full), pl.BlockSpec(bl.shape, full),
            ],
            out_specs=[
                pl.BlockSpec((tile_b, h3), lambda i: (i, 0)),
                pl.BlockSpec((tile_b, 1), lambda i: (i, 0)),
            ],
        ),
        compiler_params=pltpu.CompilerParams(
            dimension_semantics=("parallel",)),   # batch axis shards across TCs
        cost_estimate=cost,
    )(x2, w1b, b1, w2b, b2, w3b, b3, wl, bl)

    # PyTorch: d = self.map_last(x).squeeze()  (removes all size-1 dims)
    d = jnp.squeeze(d)
    return feat, d


def _reference_forward(x, params, *, p=P, prob=PROB):
    """Pure-JAX reference mirroring the PyTorch module (same bf16 matmul math)."""
    x2 = x.reshape(-1, p).astype(jnp.float32)
    w1, b1, w2, b2, w3, b3, wl, bl = params

    def mm(a, w):
        return jnp.dot(a.astype(jnp.bfloat16), w.astype(jnp.bfloat16),
                       preferred_element_type=jnp.float32)

    h = _apply_act(mm(x2, w1) + b1, ACTIVATION_1)
    h = _apply_act(mm(h, w2) + b2, ACTIVATION)
    h = _apply_act(mm(h, w3) + b3, ACTIVATION_N)
    d = jnp.sum(h * wl, axis=-1) + bl[0, 0]
    if prob:
        d = jax.nn.sigmoid(d)
    return h, jnp.squeeze(d)


if __name__ == "__main__":
    key = jax.random.PRNGKey(0)
    k_x1, k_x2, k_x3, k_p = jax.random.split(key, 4)
    params = init_params(k_p, P, HIDDEN_UNITS)

    # Case 1: small deterministic input; view(-1, p) flattens -> (16, 32).
    x = jax.random.normal(k_x1, (2, 8, P), jnp.float32)
    feat, d = discriminator_forward(x, params)
    jax.block_until_ready((feat, d))
    feat_ref, d_ref = _reference_forward(x, params)
    np.testing.assert_allclose(np.asarray(feat), np.asarray(feat_ref),
                               rtol=2e-3, atol=2e-3)
    np.testing.assert_allclose(np.asarray(d), np.asarray(d_ref),
                               rtol=2e-3, atol=2e-3)
    assert feat.shape == (16, HIDDEN_UNITS[-1])
    assert d.shape == (16,)

    # Case 2: batch not a multiple of 8 (exercises the masked ragged tail,
    # no wrapper-side padding).
    x_odd = jax.random.normal(k_x2, (3, 5, P), jnp.float32)   # -> 15 rows
    feat2, d2 = discriminator_forward(x_odd, params)
    jax.block_until_ready((feat2, d2))
    feat2_ref, d2_ref = _reference_forward(x_odd, params)
    np.testing.assert_allclose(np.asarray(feat2), np.asarray(feat2_ref),
                               rtol=2e-3, atol=2e-3)
    np.testing.assert_allclose(np.asarray(d2), np.asarray(d2_ref),
                               rtol=2e-3, atol=2e-3)
    assert feat2.shape == (15, HIDDEN_UNITS[-1])
    assert d2.shape == (15,)

    # Case 3: batch above SMALL_BATCH -> 2 grid steps (v7x dual-TC path) with
    # a ragged last block, bf16 input accepted directly.
    x_big = jax.random.normal(k_x3, (300, P), jnp.float32).astype(jnp.bfloat16)
    feat3, d3 = discriminator_forward(x_big, params)
    jax.block_until_ready((feat3, d3))
    feat3_ref, d3_ref = _reference_forward(x_big.astype(jnp.float32), params)
    np.testing.assert_allclose(np.asarray(feat3), np.asarray(feat3_ref),
                               rtol=2e-2, atol=2e-2)
    np.testing.assert_allclose(np.asarray(d3), np.asarray(d3_ref),
                               rtol=2e-2, atol=2e-2)
    assert feat3.shape == (300, HIDDEN_UNITS[-1])
    assert d3.shape == (300,)

    print("KERNEL_OK")
</pallas_src>

<mosaic_0001>
module attributes {stable_mosaic.version = 11 : i64} {
  func.func @discriminator_kernel(%arg0: i32, %arg1: memref<16x32xf32, #tpu.memory_space<vmem>>, %arg2: memref<32x64xbf16, #tpu.memory_space<vmem>>, %arg3: memref<1x64xf32, #tpu.memory_space<vmem>>, %arg4: memref<64x128xbf16, #tpu.memory_space<vmem>>, %arg5: memref<1x128xf32, #tpu.memory_space<vmem>>, %arg6: memref<128x32xbf16, #tpu.memory_space<vmem>>, %arg7: memref<1x32xf32, #tpu.memory_space<vmem>>, %arg8: memref<1x32xf32, #tpu.memory_space<vmem>>, %arg9: memref<1x1xf32, #tpu.memory_space<vmem>>, %arg10: memref<16x32xf32, #tpu.memory_space<vmem>>, %arg11: memref<16x1xf32, #tpu.memory_space<vmem>>) attributes {dimension_semantics = [#tpu.dimension_semantics<parallel>], iteration_bounds = array<i64: 1>, scalar_prefetch = 0 : i64, scratch_operands = 0 : i64, tpu.core_type = #tpu.core_type<tc>, window_params = [{transform_indices = @transform_0, window_bounds = array<i64: 16, 32>}, {pipeline_mode = #tpu.pipeline_mode<synchronous>, transform_indices = @transform_1, window_bounds = array<i64: 32, 64>}, {pipeline_mode = #tpu.pipeline_mode<synchronous>, transform_indices = @transform_2, window_bounds = array<i64: 1, 64>}, {pipeline_mode = #tpu.pipeline_mode<synchronous>, transform_indices = @transform_3, window_bounds = array<i64: 64, 128>}, {pipeline_mode = #tpu.pipeline_mode<synchronous>, transform_indices = @transform_4, window_bounds = array<i64: 1, 128>}, {pipeline_mode = #tpu.pipeline_mode<synchronous>, transform_indices = @transform_5, window_bounds = array<i64: 128, 32>}, {pipeline_mode = #tpu.pipeline_mode<synchronous>, transform_indices = @transform_6, window_bounds = array<i64: 1, 32>}, {pipeline_mode = #tpu.pipeline_mode<synchronous>, transform_indices = @transform_7, window_bounds = array<i64: 1, 32>}, {pipeline_mode = #tpu.pipeline_mode<synchronous>, transform_indices = @transform_8, window_bounds = array<i64: 1, 1>}, {transform_indices = @transform_9, window_bounds = array<i64: 16, 32>}, {transform_indices = @transform_10, window_bounds = array<i64: 16, 1>}]} {
    %c0 = arith.constant 0 : index
    %c0_0 = arith.constant 0 : index
    %0 = vector.load %arg1[%c0, %c0_0] : memref<16x32xf32, #tpu.memory_space<vmem>>, vector<16x32xf32>
    %1 = arith.truncf %0 : vector<16x32xf32> to vector<16x32xbf16>
    %c0_1 = arith.constant 0 : index
    %c0_2 = arith.constant 0 : index
    %2 = vector.load %arg2[%c0_1, %c0_2] : memref<32x64xbf16, #tpu.memory_space<vmem>>, vector<32x64xbf16>
    %cst = arith.constant dense<0.000000e+00> : vector<16x64xf32>
    %3 = tpu.matmul %1, %2, %cst {dimension_numbers = #tpu.dot_dimension_numbers<[1], [0], [0], [1], [0, 0, 1, 1], [], []>} : vector<16x32xbf16>, vector<32x64xbf16>, vector<16x64xf32> -> vector<16x64xf32>
    %c0_3 = arith.constant 0 : index
    %c0_4 = arith.constant 0 : index
    %4 = vector.load %arg3[%c0_3, %c0_4] : memref<1x64xf32, #tpu.memory_space<vmem>>, vector<1x64xf32>
    %5 = vector.broadcast %4 : vector<1x64xf32> to vector<16x64xf32>
    %6 = arith.addf %3, %5 : vector<16x64xf32>
    %7 = arith.negf %6 : vector<16x64xf32>
    %8 = math.exp %7 : vector<16x64xf32>
    %cst_5 = arith.constant 1.000000e+00 : f32
    %9 = vector.broadcast %cst_5 : f32 to vector<16x64xf32>
    %10 = arith.addf %9, %8 : vector<16x64xf32>
    %11 = arith.divf %9, %10 : vector<16x64xf32>
    %12 = arith.truncf %11 : vector<16x64xf32> to vector<16x64xbf16>
    %c0_6 = arith.constant 0 : index
    %c0_7 = arith.constant 0 : index
    %13 = vector.load %arg4[%c0_6, %c0_7] : memref<64x128xbf16, #tpu.memory_space<vmem>>, vector<64x128xbf16>
    %cst_8 = arith.constant dense<0.000000e+00> : vector<16x128xf32>
    %14 = tpu.matmul %12, %13, %cst_8 {dimension_numbers = #tpu.dot_dimension_numbers<[1], [0], [0], [1], [0, 0, 1, 1], [], []>} : vector<16x64xbf16>, vector<64x128xbf16>, vector<16x128xf32> -> vector<16x128xf32>
    %c0_9 = arith.constant 0 : index
    %c0_10 = arith.constant 0 : index
    %15 = vector.load %arg5[%c0_9, %c0_10] : memref<1x128xf32, #tpu.memory_space<vmem>>, vector<1x128xf32>
    %16 = vector.broadcast %15 : vector<1x128xf32> to vector<16x128xf32>
    %17 = arith.addf %14, %16 : vector<16x128xf32>
    %cst_11 = arith.constant 0.000000e+00 : f32
    %18 = vector.broadcast %cst_11 : f32 to vector<16x128xf32>
    %19 = arith.cmpf oge, %17, %18 : vector<16x128xf32>
    %cst_12 = arith.constant 2.000000e-01 : f32
    %20 = vector.broadcast %cst_12 : f32 to vector<16x128xf32>
    %21 = arith.mulf %20, %17 : vector<16x128xf32>
    %22 = arith.select %19, %17, %21 : vector<16x128xi1>, vector<16x128xf32>
    %23 = arith.truncf %22 : vector<16x128xf32> to vector<16x128xbf16>
    %c0_13 = arith.constant 0 : index
    %c0_14 = arith.constant 0 : index
    %24 = vector.load %arg6[%c0_13, %c0_14] : memref<128x32xbf16, #tpu.memory_space<vmem>>, vector<128x32xbf16>
    %cst_15 = arith.constant dense<0.000000e+00> : vector<16x32xf32>
    %25 = tpu.matmul %23, %24, %cst_15 {dimension_numbers = #tpu.dot_dimension_numbers<[1], [0], [0], [1], [0, 0, 1, 1], [], []>} : vector<16x128xbf16>, vector<128x32xbf16>, vector<16x32xf32> -> vector<16x32xf32>
    %c0_16 = arith.constant 0 : index
    %c0_17 = arith.constant 0 : index
    %26 = vector.load %arg7[%c0_16, %c0_17] : memref<1x32xf32, #tpu.memory_space<vmem>>, vector<1x32xf32>
    %27 = vector.broadcast %26 : vector<1x32xf32> to vector<16x32xf32>
    %28 = arith.addf %25, %27 : vector<16x32xf32>
    %cst_18 = arith.constant 0.000000e+00 : f32
    %29 = vector.broadcast %cst_18 : f32 to vector<16x32xf32>
    %30 = arith.maximumf %28, %29 : vector<16x32xf32>
    %c0_19 = arith.constant 0 : index
    %c0_20 = arith.constant 0 : index
    %31 = vector.load %arg10[%c0_19, %c0_20] : memref<16x32xf32, #tpu.memory_space<vmem>>, vector<16x32xf32>
    tpu.vector_store %arg10[%c0_19, %c0_20], %30 {strides = array<i32>} : memref<16x32xf32, #tpu.memory_space<vmem>>, vector<16x32xf32>,
    %c0_21 = arith.constant 0 : index
    %c0_22 = arith.constant 0 : index
    %32 = vector.load %arg8[%c0_21, %c0_22] : memref<1x32xf32, #tpu.memory_space<vmem>>, vector<1x32xf32>
    %33 = vector.broadcast %32 : vector<1x32xf32> to vector<16x32xf32>
    %34 = arith.mulf %30, %33 : vector<16x32xf32>
    %cst_23 = arith.constant dense<0.000000e+00> : vector<16xf32>
    %35 = vector.multi_reduction <add>, %34, %cst_23 [1] : vector<16x32xf32> to vector<16xf32>
    %36 = vector.shape_cast %35 : vector<16xf32> to vector<16x1xf32>
    %c0_24 = arith.constant 0 : index
    %c0_25 = arith.constant 0 : index
    %37 = vector.load %arg9[%c0_24, %c0_25] : memref<1x1xf32, #tpu.memory_space<vmem>>, vector<1x1xf32>
    %38 = vector.broadcast %37 : vector<1x1xf32> to vector<16x1xf32>
    %39 = arith.addf %36, %38 : vector<16x1xf32>
    %40 = arith.negf %39 : vector<16x1xf32>
    %41 = math.exp %40 : vector<16x1xf32>
    %cst_26 = arith.constant 1.000000e+00 : f32
    %42 = vector.broadcast %cst_26 : f32 to vector<16x1xf32>
    %43 = arith.addf %42, %41 : vector<16x1xf32>
    %44 = arith.divf %42, %43 : vector<16x1xf32>
    %c0_27 = arith.constant 0 : index
    %c0_28 = arith.constant 0 : index
    %45 = vector.load %arg11[%c0_27, %c0_28] : memref<16x1xf32, #tpu.memory_space<vmem>>, vector<16x1xf32>
    tpu.vector_store %arg11[%c0_27, %c0_28], %44 {strides = array<i32>} : memref<16x1xf32, #tpu.memory_space<vmem>>, vector<16x1xf32>,
    return
  }
  func.func @transform_0(%arg0: i32) -> (i32, i32) {
    %c0_i32 = arith.constant 0 : i32
    %c0_i32_0 = arith.constant 0 : i32
    return %arg0, %c0_i32 : i32, i32
  }
  func.func @transform_1(%arg0: i32) -> (i32, i32) {
    %c0_i32 = arith.constant 0 : i32
    %c0_i32_0 = arith.constant 0 : i32
    %c0_i32_1 = arith.constant 0 : i32
    return %c0_i32, %c0_i32_0 : i32, i32
  }
  func.func @transform_2(%arg0: i32) -> (i32, i32) {
    %c0_i32 = arith.constant 0 : i32
    %c0_i32_0 = arith.constant 0 : i32
    %c0_i32_1 = arith.constant 0 : i32
    return %c0_i32, %c0_i32_0 : i32, i32
  }
  func.func @transform_3(%arg0: i32) -> (i32, i32) {
    %c0_i32 = arith.constant 0 : i32
    %c0_i32_0 = arith.constant 0 : i32
    %c0_i32_1 = arith.constant 0 : i32
    return %c0_i32, %c0_i32_0 : i32, i32
  }
  func.func @transform_4(%arg0: i32) -> (i32, i32) {
    %c0_i32 = arith.constant 0 : i32
    %c0_i32_0 = arith.constant 0 : i32
    %c0_i32_1 = arith.constant 0 : i32
    return %c0_i32, %c0_i32_0 : i32, i32
  }
  func.func @transform_5(%arg0: i32) -> (i32, i32) {
    %c0_i32 = arith.constant 0 : i32
    %c0_i32_0 = arith.constant 0 : i32
    %c0_i32_1 = arith.constant 0 : i32
    return %c0_i32, %c0_i32_0 : i32, i32
  }
  func.func @transform_6(%arg0: i32) -> (i32, i32) {
    %c0_i32 = arith.constant 0 : i32
    %c0_i32_0 = arith.constant 0 : i32
    %c0_i32_1 = arith.constant 0 : i32
    return %c0_i32, %c0_i32_0 : i32, i32
  }
  func.func @transform_7(%arg0: i32) -> (i32, i32) {
    %c0_i32 = arith.constant 0 : i32
    %c0_i32_0 = arith.constant 0 : i32
    %c0_i32_1 = arith.constant 0 : i32
    return %c0_i32, %c0_i32_0 : i32, i32
  }
  func.func @transform_8(%arg0: i32) -> (i32, i32) {
    %c0_i32 = arith.constant 0 : i32
    %c0_i32_0 = arith.constant 0 : i32
    %c0_i32_1 = arith.constant 0 : i32
    return %c0_i32, %c0_i32_0 : i32, i32
  }
  func.func @transform_9(%arg0: i32) -> (i32, i32) {
    %c0_i32 = arith.constant 0 : i32
    %c0_i32_0 = arith.constant 0 : i32
    return %arg0, %c0_i32 : i32, i32
  }
  func.func @transform_10(%arg0: i32) -> (i32, i32) {
    %c0_i32 = arith.constant 0 : i32
    %c0_i32_0 = arith.constant 0 : i32
    return %arg0, %c0_i32 : i32, i32
  }
}

</mosaic_0001>

<llo_original>
// kernel: tpu_custom_call.1
$region0: #{tpu_custom_call.1}
  #allocation0 [shape = 'u32[]', space=smem, size = 0x4, offset = 0x4, fixed_abs, tag = 'smem constant byte address 0x4 - core index']
  #allocation1 [shape = 'u32[144,128]{1,0:T(1,128)}', space=vmem, size = 0x12000, scoped, tag = 'internal scratch']
  #allocation2 [shape = 'f32[1,1]{1,0:T(1,128)S(1)}', space=vmem, size = 0x200, scoped, tag = 'scoped memory for tpu_custom_call.1']
  %s0 = inlined_call_operand.vmem [shape: f32[16,32], index: 0, kind: input, shape index: {}]
  %s1 = inlined_call_operand.vmem [shape: bf16[32,64], index: 1, kind: input, shape index: {}]
  %s2 = inlined_call_operand.vmem [shape: f32[1,64], index: 2, kind: input, shape index: {}]
  %s3 = inlined_call_operand.vmem [shape: bf16[64,128], index: 3, kind: input, shape index: {}]
  %s4 = inlined_call_operand.vmem [shape: f32[1,128], index: 4, kind: input, shape index: {}]
  %s5 = inlined_call_operand.vmem [shape: bf16[128,32], index: 5, kind: input, shape index: {}]
  %s6 = inlined_call_operand.vmem [shape: f32[1,32], index: 6, kind: input, shape index: {}]
  %s7 = inlined_call_operand.vmem [shape: f32[1,32], index: 7, kind: input, shape index: {}]
  %s8 = inlined_call_operand.<no memory space> [shape: f32[1,1], index: 8, kind: input, shape index: {}]
  %s9 = inlined_call_operand.hbm [shape: f32[16,32], index: 9, kind: output, shape index: {0}]
  %s10 = inlined_call_operand.vmem [shape: f32[16,1], index: 10, kind: output, shape index: {1}]
  %11 = xla_tuple %s9, %s10
  %s12 = sld [smem:[#allocation0]]
  $region54: #{tpu_custom_call.1} parent=0
    _
  %s14 = ssub.s32 1, %s12
  %s15 = scalar_select 0, %s14, %s12
  %v16 = vstv %s8
  %17 = vst [vmem:[#allocation2] sm:$0x1] %v16
  $region1: #{tpu_custom_call.1} parent=0
    #allocation3 [shape = 'u8[8192]{0}', space=vmem, size = 0x2000, scoped, tag = 'output window, operand 0, single buffered']
    #allocation4 [shape = 's32[1]{0}', space=sflag, size = 0x4, scoped, tag = 'scoped memory for tpu_custom_call.1']
    %18 = vsyncpa [#allocation4], 0
    // Predicated region
    $region2: #{tpu_custom_call.1} parent=1 // pred_check
      _
    $region3: #{tpu_custom_call.1} parent=1 // pred_check_branch
      %20 = sbr.rel (0) target = $region5
    $region4: #{tpu_custom_call.1} parent=1 // pred_region
      _
    $region5: #{tpu_custom_call.1} parent=1 // pred_fallthru
      _
    // Predicated region
    $region6: #{tpu_custom_call.1} parent=1 // pred_check
      _
    $region7: #{tpu_custom_call.1} parent=1 // pred_check_branch
      %22 = sbr.rel (0) target = $region9
    $region8: #{tpu_custom_call.1} parent=1 // pred_region
      _
    $region9: #{tpu_custom_call.1} parent=1 // pred_fallthru
      _
    // Predicated region
    $region10: #{tpu_custom_call.1} parent=1 // pred_check
      _
    $region11: #{tpu_custom_call.1} parent=1 // pred_check_branch
      %24 = sbr.rel (0) target = $region13
    $region12: #{tpu_custom_call.1} parent=1 // pred_region
      _
    $region13: #{tpu_custom_call.1} parent=1 // pred_fallthru
      _
    // Predicated region
    $region14: #{tpu_custom_call.1} parent=1 // pred_check
      _
    $region15: #{tpu_custom_call.1} parent=1 // pred_check_branch
      %26 = sbr.rel (0) target = $region17
    $region16: #{tpu_custom_call.1} parent=1 // pred_region
      _
    $region17: #{tpu_custom_call.1} parent=1 // pred_fallthru
      _
    // Predicated region
    $region18: #{tpu_custom_call.1} parent=1 // pred_check
      _
    $region19: #{tpu_custom_call.1} parent=1 // pred_check_branch
      %28 = sbr.rel (0) target = $region21
    $region20: #{tpu_custom_call.1} parent=1 // pred_region
      _
    $region21: #{tpu_custom_call.1} parent=1 // pred_fallthru
      _
    // Predicated region
    $region22: #{tpu_custom_call.1} parent=1 // pred_check
      _
    $region23: #{tpu_custom_call.1} parent=1 // pred_check_branch
      %30 = sbr.rel (0) target = $region25
    $region24: #{tpu_custom_call.1} parent=1 // pred_region
      _
    $region25: #{tpu_custom_call.1} parent=1 // pred_fallthru
      _
    // Predicated region
    $region26: #{tpu_custom_call.1} parent=1 // pred_check
      _
    $region27: #{tpu_custom_call.1} parent=1 // pred_check_branch
      %32 = sbr.rel (0) target = $region29
    $region28: #{tpu_custom_call.1} parent=1 // pred_region
      _
    $region29: #{tpu_custom_call.1} parent=1 // pred_fallthru
      _
    // Predicated region
    $region30: #{tpu_custom_call.1} parent=1 // pred_check
      _
    $region31: #{tpu_custom_call.1} parent=1 // pred_check_branch
      %34 = sbr.rel (0) target = $region33
    $region32: #{tpu_custom_call.1} parent=1 // pred_region
      _
    $region33: #{tpu_custom_call.1} parent=1 // pred_fallthru
      _
    // Predicated region
    $region34: #{tpu_custom_call.1} parent=1 // pred_check
      _
    $region35: #{tpu_custom_call.1} parent=1 // pred_check_branch
      %36 = sbr.rel (0) target = $region37
    $region36: #{tpu_custom_call.1} parent=1 // pred_region
      _
    $region37: #{tpu_custom_call.1} parent=1 // pred_fallthru
      _
    %v38 = vld [vmem:[%s0] sm:$0xff]
    %v39 = vld [vmem:[%s0 + $0x8] sm:$0xff]
    %v40 = vpack.c.bf16 %v39, %v38
    %v41 = vld [vmem:[%s1] sm:$0xf]
    %v42 = vld [vmem:[%s1 + $0x4] sm:$0xf]
    %v43 = vld [vmem:[%s1 + $0x8] sm:$0xf]
    %v44 = vld [vmem:[%s1 + $0xc] sm:$0xf]
    %v45 = vld [vmem:[%s2] sm:$0x1]
    %v47 = vlaneseq
    %v48 = vshrl.u32 %v47, 7
    %v49 = vsub.s32 0, %v48
    %v50 = vrot.slane %v45, %v49
    %v56 = vunpack.c.l.b16 %v41
    %v57 = vunpack.c.l.b16 %v42
    %v58 = vunpack.c.l.b16 %v43
    %v59 = vunpack.c.l.b16 %v44
    %v60 = vpack.c.b16 %v57, %v56
    %v61 = vpack.c.b16 %v59, %v58
    %vm64 = vcmask 261120
    %v66 = vsel %vm64, %v40, 0
    %68 = vmatprep.subr.bf16.mxu0 0
    %69 = vmatpush1.bf16.msra.mxu0 0
    %70 = vmatprep.subr.bf16.mxu0 0
    %71 = vmatpush1.bf16.msra.mxu0 0
    %72 = vmatprep.subr.bf16.mxu0 0
    %73 = vmatpush1.bf16.msra.mxu0 0
    %74 = vmatprep.subr.bf16.mxu0 0
    %75 = vmatpush1.bf16.msra.mxu0 0
    %76 = vmatprep.subr.bf16.mxu0 0
    %77 = vmatpush1.bf16.msra.mxu0 0
    %78 = vmatprep.subr.bf16.mxu0 0
    %79 = vmatpush1.bf16.msra.mxu0 0
    %80 = vmatprep.subr.bf16.mxu0 0
    %81 = vmatpush1.bf16.msra.mxu0 %v61
    %82 = vmatprep.subr.bf16.mxu0 0
    %83 = vmatpush1.bf16.msra.mxu0 %v60
    %84 = vmatprep.subr.bf16.mxu0 0
    %85 = vmatpush2.bf16.msra.mxu0 0
    %86 = vmatprep.subr.bf16.mxu0 0
    %87 = vmatpush2.bf16.msra.mxu0 0
    %88 = vmatprep.subr.bf16.mxu0 0
    %89 = vmatpush2.bf16.msra.mxu0 0
    %90 = vmatprep.subr.bf16.mxu0 0
    %91 = vmatpush2.bf16.msra.mxu0 0
    %92 = vmatprep.subr.bf16.mxu0 0
    %93 = vmatpush2.bf16.msra.mxu0 0
    %94 = vmatprep.subr.bf16.mxu0 0
    %95 = vmatpush2.bf16.msra.mxu0 0
    %96 = vmatprep.subr.bf16.mxu0 0
    %97 = vmatpush2.bf16.msra.mxu0 0
    %98 = vmatprep.subr.bf16.mxu0 0
    %99 = vmatpush2.bf16.msra.mxu0 0
    %100 = vmatprep.mubr.bf16.mxu0 0
    %101 = vmatmul.mubr.bf16.gmra.mxu0 %v66
    %v102 = vpop.f32.mrf.mxu0
    %v103 = vadd.f32 %v50, %v102
    %v104 = vpop.f32.mrf.mxu0
    %v105 = vpop.f32.mrf.mxu0
    %v106 = vadd.f32 %v50, %v105
    %v107 = vpop.f32.mrf.mxu0
    %108 = vdwg.mxu0
    %v109 = vxor.u32 %v103, 2147483648
    %v110 = vxor.u32 %v106, 2147483648
    %v111 = vmul.f32 %v109, 1.442695
    %v112 = vpow.pop %v111
    %v113 = vmul.f32 %v110, 1.442695
    %v114 = vpow.pop %v113
    %v115 = vadd.f32 %v112, 1.0
    %v116 = vadd.f32 %v114, 1.0
    %v117 = vrcp.pop %v115
    %v118 = vmul.f32 1.0, %v117
    %v119 = vrcp.pop %v116
    %v120 = vmul.f32 1.0, %v119
    %v121 = vpack.c.bf16 %v120, %v118
    %v122 = vld [vmem:[%s3] sm:$0xf]
    %v123 = vld [vmem:[%s3 + $0x4] sm:$0xf]
    %v124 = vld [vmem:[%s3 + $0x8] sm:$0xf]
    %v125 = vld [vmem:[%s3 + $0xc] sm:$0xf]
    %v126 = vld [vmem:[%s3 + $0x10] sm:$0xf]
    %v127 = vld [vmem:[%s3 + $0x14] sm:$0xf]
    %v128 = vld [vmem:[%s3 + $0x18] sm:$0xf]
    %v129 = vld [vmem:[%s3 + $0x1c] sm:$0xf]
    %v130 = vld [vmem:[%s4] sm:$0x1]
    %v132 = vlaneseq
    %v133 = vshrl.u32 %v132, 7
    %v134 = vsub.s32 0, %v133
    %v135 = vrot.slane %v130, %v134
    %v145 = vunpack.c.l.b16 %v122
    %v146 = vunpack.c.l.b16 %v123
    %v147 = vunpack.c.l.b16 %v124
    %v148 = vunpack.c.l.b16 %v125
    %v149 = vunpack.c.l.b16 %v126
    %v150 = vunpack.c.l.b16 %v127
    %v151 = vunpack.c.l.b16 %v128
    %v152 = vunpack.c.l.b16 %v129
    %v153 = vpack.c.b16 %v146, %v145
    %v154 = vpack.c.b16 %v148, %v147
    %v155 = vpack.c.b16 %v150, %v149
    %v156 = vpack.c.b16 %v152, %v151
    %vm161 = vcmask 523264
    %v163 = vsel %vm161, %v121, 0
    %165 = vmatprep.subr.bf16.mxu0 0
    %166 = vmatpush1.bf16.msra.mxu0 0
    %167 = vmatprep.subr.bf16.mxu0 0
    %168 = vmatpush1.bf16.msra.mxu0 0
    %169 = vmatprep.subr.bf16.mxu0 0
    %170 = vmatpush1.bf16.msra.mxu0 0
    %171 = vmatprep.subr.bf16.mxu0 0
    %172 = vmatpush1.bf16.msra.mxu0 0
    %173 = vmatprep.subr.bf16.mxu0 0
    %174 = vmatpush1.bf16.msra.mxu0 %v156
    %175 = vmatprep.subr.bf16.mxu0 0
    %176 = vmatpush1.bf16.msra.mxu0 %v155
    %177 = vmatprep.subr.bf16.mxu0 0
    %178 = vmatpush1.bf16.msra.mxu0 %v154
    %179 = vmatprep.subr.bf16.mxu0 0
    %180 = vmatpush1.bf16.msra.mxu0 %v153
    %181 = vmatprep.subr.bf16.mxu0 0
    %182 = vmatpush2.bf16.msra.mxu0 0
    %183 = vmatprep.subr.bf16.mxu0 0
    %184 = vmatpush2.bf16.msra.mxu0 0
    %185 = vmatprep.subr.bf16.mxu0 0
    %186 = vmatpush2.bf16.msra.mxu0 0
    %187 = vmatprep.subr.bf16.mxu0 0
    %188 = vmatpush2.bf16.msra.mxu0 0
    %189 = vmatprep.subr.bf16.mxu0 0
    %190 = vmatpush2.bf16.msra.mxu0 0
    %191 = vmatprep.subr.bf16.mxu0 0
    %192 = vmatpush2.bf16.msra.mxu0 0
    %193 = vmatprep.subr.bf16.mxu0 0
    %194 = vmatpush2.bf16.msra.mxu0 0
    %195 = vmatprep.subr.bf16.mxu0 0
    %196 = vmatpush2.bf16.msra.mxu0 0
    %197 = vmatprep.mubr.bf16.mxu0 0
    %198 = vmatmul.mubr.bf16.gmra.mxu0 %v163
    %v199 = vpop.f32.mrf.mxu0
    %v200 = vadd.f32 %v135, %v199
    %v201 = vpop.f32.mrf.mxu0
    %v202 = vpop.f32.mrf.mxu0
    %v203 = vadd.f32 %v135, %v202
    %v204 = vpop.f32.mrf.mxu0
    %205 = vdwg.mxu0
    %vm206 = vcmp.ge.f32.partialorder %v200, 0.0
    %vm207 = vcmp.ge.f32.partialorder %v203, 0.0
    %v208 = vmul.f32 %v200, 0.2
    %v209 = vmul.f32 %v203, 0.2
    %v210 = vsel %vm206, %v200, %v208
    %v211 = vsel %vm207, %v203, %v209
    %v212 = vpack.c.bf16 %v211, %v210
    %v213 = vld [vmem:[%s5] sm:$0xf]
    %v214 = vld [vmem:[%s5 + $0x4] sm:$0xf]
    %v215 = vld [vmem:[%s5 + $0x8] sm:$0xf]
    %v216 = vld [vmem:[%s5 + $0xc] sm:$0xf]
    %v217 = vld [vmem:[%s5 + $0x10] sm:$0xf]
    %v218 = vld [vmem:[%s5 + $0x14] sm:$0xf]
    %v219 = vld [vmem:[%s5 + $0x18] sm:$0xf]
    %v220 = vld [vmem:[%s5 + $0x1c] sm:$0xf]
    %v221 = vld [vmem:[%s5 + $0x20] sm:$0xf]
    %v222 = vld [vmem:[%s5 + $0x24] sm:$0xf]
    %v223 = vld [vmem:[%s5 + $0x28] sm:$0xf]
    %v224 = vld [vmem:[%s5 + $0x2c] sm:$0xf]
    %v225 = vld [vmem:[%s5 + $0x30] sm:$0xf]
    %v226 = vld [vmem:[%s5 + $0x34] sm:$0xf]
    %v227 = vld [vmem:[%s5 + $0x38] sm:$0xf]
    %v228 = vld [vmem:[%s5 + $0x3c] sm:$0xf]
    %v229 = vld [vmem:[%s6] sm:$0x1]
    %v231 = vlaneseq
    %v232 = vshrl.u32 %v231, 7
    %v233 = vsub.s32 0, %v232
    %v234 = vrot.slane %v229, %v233
    %v252 = vunpack.c.l.b16 %v213
    %v253 = vunpack.c.l.b16 %v214
    %v254 = vunpack.c.l.b16 %v215
    %v255 = vunpack.c.l.b16 %v216
    %v256 = vunpack.c.l.b16 %v217
    %v257 = vunpack.c.l.b16 %v218
    %v258 = vunpack.c.l.b16 %v219
    %v259 = vunpack.c.l.b16 %v220
    %v260 = vunpack.c.l.b16 %v221
    %v261 = vunpack.c.l.b16 %v222
    %v262 = vunpack.c.l.b16 %v223
    %v263 = vunpack.c.l.b16 %v224
    %v264 = vunpack.c.l.b16 %v225
    %v265 = vunpack.c.l.b16 %v226
    %v266 = vunpack.c.l.b16 %v227
    %v267 = vunpack.c.l.b16 %v228
    %v268 = vpack.c.b16 %v253, %v252
    %v269 = vpack.c.b16 %v255, %v254
    %v270 = vpack.c.b16 %v257, %v256
    %v271 = vpack.c.b16 %v259, %v258
    %v272 = vpack.c.b16 %v261, %v260
    %v273 = vpack.c.b16 %v263, %v262
    %v274 = vpack.c.b16 %v265, %v264
    %v275 = vpack.c.b16 %v267, %v266
    %284 = vmatprep.subr.bf16.mxu0 0
    %285 = vmatpush1.bf16.msra.mxu0 %v275
    %286 = vmatprep.subr.bf16.mxu0 0
    %287 = vmatpush1.bf16.msra.mxu0 %v274
    %288 = vmatprep.subr.bf16.mxu0 0
    %289 = vmatpush1.bf16.msra.mxu0 %v273
    %290 = vmatprep.subr.bf16.mxu0 0
    %291 = vmatpush1.bf16.msra.mxu0 %v272
    %292 = vmatprep.subr.bf16.mxu0 0
    %293 = vmatpush1.bf16.msra.mxu0 %v271
    %294 = vmatprep.subr.bf16.mxu0 0
    %295 = vmatpush1.bf16.msra.mxu0 %v270
    %296 = vmatprep.subr.bf16.mxu0 0
    %297 = vmatpush1.bf16.msra.mxu0 %v269
    %298 = vmatprep.subr.bf16.mxu0 0
    %299 = vmatpush1.bf16.msra.mxu0 %v268
    %300 = vmatprep.subr.bf16.mxu0 0
    %301 = vmatpush2.bf16.msra.mxu0 0
    %302 = vmatprep.subr.bf16.mxu0 0
    %303 = vmatpush2.bf16.msra.mxu0 0
    %304 = vmatprep.subr.bf16.mxu0 0
    %305 = vmatpush2.bf16.msra.mxu0 0
    %306 = vmatprep.subr.bf16.mxu0 0
    %307 = vmatpush2.bf16.msra.mxu0 0
    %308 = vmatprep.subr.bf16.mxu0 0
    %309 = vmatpush2.bf16.msra.mxu0 0
    %310 = vmatprep.subr.bf16.mxu0 0
    %311 = vmatpush2.bf16.msra.mxu0 0
    %312 = vmatprep.subr.bf16.mxu0 0
    %313 = vmatpush2.bf16.msra.mxu0 0
    %314 = vmatprep.subr.bf16.mxu0 0
    %315 = vmatpush2.bf16.msra.mxu0 0
    %316 = vmatprep.mubr.bf16.mxu0 0
    %317 = vmatmul.mubr.bf16.gmra.mxu0 %v212
    %v318 = vpop.f32.mrf.mxu0
    %v319 = vadd.f32 %v234, %v318
    %v320 = vpop.f32.mrf.mxu0
    %v321 = vpop.f32.mrf.mxu0
    %v322 = vadd.f32 %v234, %v321
    %v323 = vpop.f32.mrf.mxu0
    %324 = vdwg.mxu0
    %v325 = vmax.f32 %v319, 0.0
    %v326 = vmax.f32 %v322, 0.0
    %327 = vst.msk [vmem:[#allocation3] sm:$0xff] %vm64, %v325
    %328 = vst.msk [vmem:[#allocation3 + $0x8] sm:$0xff] %vm64, %v326
    %v329 = vld [vmem:[%s7] sm:$0x1]
    %v331 = vlaneseq
    %v332 = vshrl.u32 %v331, 7
    %v333 = vsub.s32 0, %v332
    %v334 = vrot.slane %v329, %v333
    %v336 = vmul.f32 %v325, %v334
    %v337 = vmul.f32 %v326, %v334
    %v338 = vsel %vm64, %v336, 0.0
    %339 = vadd.xlane.f32.xlu0 %v338
    %v340 = vpop.xlane.xlu0 %339
    %v341 = vsel %vm64, %v337, 0.0
    %342 = vadd.xlane.f32.xlu0 %v341
    %v343 = vpop.xlane.xlu0 %342
    %v344 = vld [vmem:[#allocation2] sm:$0x1]
    %v346 = vlaneseq
    %v347 = vshrl.u32 %v346, 7
    %v348 = vsub.s32 0, %v347
    %v349 = vrot.slane %v344, %v348
    %v351 = vadd.f32 %v340, %v349
    %v352 = vadd.f32 %v343, %v349
    %v353 = vxor.u32 %v351, 2147483648
    %v354 = vxor.u32 %v352, 2147483648
    %v355 = vmul.f32 %v353, 1.442695
    %v356 = vpow.pop %v355
    %v357 = vmul.f32 %v354, 1.442695
    %v358 = vpow.pop %v357
    %v359 = vadd.f32 %v356, 1.0
    %v360 = vadd.f32 %v358, 1.0
    %v361 = vrcp.pop %v359
    %v362 = vmul.f32 1.0, %v361
    %v363 = vrcp.pop %v360
    %v364 = vmul.f32 1.0, %v363
    %vm365 = vcmask 7168
    %366 = vst.msk [vmem:[%s10] sm:$0xff] %vm365, %v362
    %367 = vst.msk [vmem:[%s10 + $0x8] sm:$0xff] %vm365, %v364
    // Predicated region
    $region38: #{tpu_custom_call.1} parent=1 // pred_check
      _
    $region39: #{tpu_custom_call.1} parent=1 // pred_check_branch
      %369 = sbr.rel (0) target = $region41
    $region40: #{tpu_custom_call.1} parent=1 // pred_region
      %s371 = ssub.s32 256, 256
      %372 = vsyncadd [#allocation4], %s371
      %s373 = sshll.u32 [#allocation3], 4
      %s374 = int_to_ptr.vmem [resolvable:$true] %s373
      %379 = dma.vmem_to_hbm [thread:$0]  %s374, 256, %s9, [#allocation4], 128, 128, 8
    $region41: #{tpu_custom_call.1} parent=1 // pred_fallthru
      _
    // Predicated region
    $region42: #{tpu_custom_call.1} parent=1 // pred_check
      _
    $region43: #{tpu_custom_call.1} parent=1 // pred_check_branch
      %381 = sbr.rel (0) target = $region45
    $region44: #{tpu_custom_call.1} parent=1 // pred_region
      _
    $region45: #{tpu_custom_call.1} parent=1 // pred_fallthru
      _
    // Predicated region
    $region46: #{tpu_custom_call.1} parent=1 // pred_check
      _
    $region47: #{tpu_custom_call.1} parent=1 // pred_check_branch
      %383 = sbr.rel (0) target = $region49
    $region48: #{tpu_custom_call.1} parent=1 // pred_region
      %384 = dma.done [#allocation4], 256
    $region49: #{tpu_custom_call.1} parent=1 // pred_fallthru
      _
    // Predicated region
    $region50: #{tpu_custom_call.1} parent=1 // pred_check
      _
    $region51: #{tpu_custom_call.1} parent=1 // pred_check_branch
      %386 = sbr.rel (0) target = $region53
    $region52: #{tpu_custom_call.1} parent=1 // pred_region
      _
    $region53: #{tpu_custom_call.1} parent=1 // pred_fallthru
      _
    %387 = vsyncpa [#allocation4], 1

</llo_original>
